<compile_context>
chip_gen: v5e
topology: v5e:2x2
jax: 0.10.0
libtpu: 0.0.40
codegen_flags: <defaults>
</compile_context>

<pallas_src>
import functools

import jax
import jax.numpy as jnp
from jax.experimental import pallas as pl
from jax.experimental.pallas import tpu as pltpu

LANES = 128            # vreg lane width
GROUP = 8              # rows per accumulation group (one f32 vreg)
MAX_TILE_ROWS = 8192   # 8192 x 128 x 4 B = 4 MiB per input block
NUM_CORES = 2          # v7x has 2 TensorCores; harmless serial factor elsewhere
VMEM_LIMIT_BYTES = 40 * 1024 * 1024


def _round_up(x, m):
    return -(-x // m) * m


def _make_kernel(total_blocks, steps_per_core, groups_full, groups_last):
    def kernel(t0_ref, o_ref, t_ref, acc_ref):
        core = pl.program_id(0)
        step = pl.program_id(1)
        gstep = core * steps_per_core + step        # global (unclamped) block id

        @pl.when(step == 0)
        def _init():
            acc_ref[...] = jnp.zeros_like(acc_ref)

        def accumulate(n_groups):
            # Fused streaming reduction over complete (8,128) groups.  Keeping
            # the four partial sums as loop-carried vregs avoids materialising
            # any (block_rows, 128) temporaries in VMEM.
            t0 = t0_ref[...].astype(jnp.float32)    # (8,128), every lane == tar[0]

            def body(g, carry):
                s_abs, s_sq, s_ts, s_ts2 = carry
                r0 = pl.multiple_of(g * GROUP, GROUP)
                o = o_ref[pl.ds(r0, GROUP), :].astype(jnp.float32)
                t = t_ref[pl.ds(r0, GROUP), :].astype(jnp.float32)
                d = t - o
                ts = t - t0
                return (s_abs + jnp.abs(d), s_sq + d * d,
                        s_ts + ts, s_ts2 + ts * ts)

            zero = jnp.zeros((GROUP, LANES), jnp.float32)
            s_abs, s_sq, s_ts, s_ts2 = jax.lax.fori_loop(
                0, n_groups, body, (zero, zero, zero, zero))
            acc_ref[0] += s_abs
            acc_ref[1] += s_sq
            acc_ref[2] += s_ts
            acc_ref[3] += s_ts2

        if groups_last == groups_full:
            # Every block is full: only the clamped duplicate step(s) coming
            # from the 2-way core split must be skipped.
            @pl.when(gstep < total_blocks)
            def _acc():
                accumulate(groups_full)
        else:
            @pl.when(gstep < total_blocks - 1)
            def _acc_full():
                accumulate(groups_full)

            @pl.when(gstep == total_blocks - 1)
            def _acc_last():
                accumulate(groups_last)

    return kernel


def _pallas_partial_sums(t0_tile, out2d, tar2d, covered_rows, max_tile_rows):
    max_tile_rows = max(16, (max_tile_rows // 16) * 16)
    block_rows = min(max_tile_rows, _round_up(covered_rows, 16))
    total_blocks = -(-covered_rows // block_rows)
    cores = NUM_CORES if total_blocks >= NUM_CORES else 1
    steps_per_core = -(-total_blocks // cores)
    groups_full = block_rows // GROUP
    groups_last = (covered_rows - (total_blocks - 1) * block_rows) // GROUP

    kernel = _make_kernel(total_blocks, steps_per_core, groups_full, groups_last)

    def block_idx(c, i):
        # Clamp so the (at most one) duplicate step of the core split re-fetches
        # the last valid block instead of running off the end of the array.
        return (jnp.minimum(c * steps_per_core + i, total_blocks - 1), 0)

    partials = pl.pallas_call(
        kernel,
        out_shape=jax.ShapeDtypeStruct((cores, 4, GROUP, LANES), jnp.float32),
        grid_spec=pltpu.PrefetchScalarGridSpec(
            num_scalar_prefetch=0,
            grid=(cores, steps_per_core),
            in_specs=[
                pl.BlockSpec((GROUP, LANES), lambda c, i: (0, 0)),    # t0 tile
                pl.BlockSpec((block_rows, LANES), block_idx),         # out
                pl.BlockSpec((block_rows, LANES), block_idx),         # tar
            ],
            out_specs=pl.BlockSpec((None, 4, GROUP, LANES),
                                   lambda c, i: (c, 0, 0, 0)),
        ),
        compiler_params=pltpu.CompilerParams(
            dimension_semantics=("parallel", "arbitrary"),
            vmem_limit_bytes=VMEM_LIMIT_BYTES,
        ),
    )(t0_tile, out2d, tar2d)

    return jnp.sum(partials, axis=(0, 2, 3))        # (4,) f32


@functools.partial(jax.jit, static_argnames=("max_tile_rows",))
def metrics_r_forward(out, tar, *, max_tile_rows=MAX_TILE_ROWS):
    """Pallas equivalent of metrics_r(mae_f, rmse_f, r2_f).forward(out, tar).

    Returns (mae, rmse, r2, None, None) with the metrics as 0-d float32 arrays.
    """
    out_flat = jnp.ravel(out)
    tar_flat = jnp.ravel(tar)
    n = out_flat.shape[0]

    t0 = tar_flat[0].astype(jnp.float32)    # shift for numerically stable ss_tot

    rows = n // LANES                       # complete 128-lane rows in the input
    covered_rows = (rows // GROUP) * GROUP  # complete (8,128) groups -> kernel
    covered = covered_rows * LANES

    sums = jnp.zeros((4,), jnp.float32)     # [sum|d|, sum d^2, sum ts, sum ts^2]

    if covered_rows > 0:
        if n % LANES == 0:
            out2d = out_flat.reshape(rows, LANES)    # pure bitcast, no copy
            tar2d = tar_flat.reshape(rows, LANES)
        else:
            # Contiguous prefix; only the < 128-element remainder is excluded.
            out2d = out_flat[:rows * LANES].reshape(rows, LANES)
            tar2d = tar_flat[:rows * LANES].reshape(rows, LANES)
        t0_tile = jnp.full((GROUP, LANES), t0, jnp.float32)
        sums = sums + _pallas_partial_sums(t0_tile, out2d, tar2d,
                                           covered_rows, max_tile_rows)

    if covered < n:
        # <= 7*128 + 127 trailing elements: fold in with plain JAX (same
        # statistics, same shift t0) -- no padded full-array copy is ever made.
        o_t = out_flat[covered:].astype(jnp.float32)
        t_t = tar_flat[covered:].astype(jnp.float32)
        d = t_t - o_t
        ts = t_t - t0
        sums = sums + jnp.stack([jnp.sum(jnp.abs(d)), jnp.sum(d * d),
                                 jnp.sum(ts), jnp.sum(ts * ts)])

    n_f = jnp.float32(n)
    s_abs, s_sq, s_ts, s_ts2 = sums[0], sums[1], sums[2], sums[3]

    mae = s_abs / n_f
    rmse = jnp.sqrt(s_sq / n_f)
    ss_res = s_sq
    ss_tot = s_ts2 - (s_ts * s_ts) / n_f    # shifted -> no catastrophic cancellation
    safe_ss_tot = jnp.where(ss_tot > 0.0, ss_tot, jnp.float32(1.0))
    r2 = jnp.where(
        ss_tot > 0.0,
        1.0 - ss_res / safe_ss_tot,
        # sklearn: constant targets -> 1.0 if predictions exact, else 0.0
        jnp.where(ss_res > 0.0, jnp.float32(0.0), jnp.float32(1.0)),
    )
    return (mae, rmse, r2, None, None)


def _reference(out, tar):
    o = jnp.ravel(out).astype(jnp.float32)
    t = jnp.ravel(tar).astype(jnp.float32)
    d = t - o
    mae = jnp.mean(jnp.abs(d))
    rmse = jnp.sqrt(jnp.mean(d * d))
    ss_res = jnp.sum(d * d)
    ss_tot = jnp.sum((t - jnp.mean(t)) ** 2)
    r2 = 1.0 - ss_res / ss_tot
    return mae, rmse, r2


def _check(res, ref, tag):
    mae, rmse, r2 = res[0], res[1], res[2]
    assert jnp.allclose(mae, ref[0], rtol=1e-4, atol=1e-5), (tag, mae, ref[0])
    assert jnp.allclose(rmse, ref[1], rtol=1e-4, atol=1e-5), (tag, rmse, ref[1])
    assert jnp.allclose(r2, ref[2], rtol=1e-3, atol=1e-4), (tag, r2, ref[2])


if __name__ == "__main__":
    key = jax.random.PRNGKey(0)
    k1, k2, k3, k4, k5, k6 = jax.random.split(key, 6)

    # Case 1: 128-aligned N -> fully zero-copy path, single block, single core.
    n1 = 2048
    tar1 = jax.random.normal(k1, (n1,), dtype=jnp.float32) * 2.0 + 0.5
    out1 = tar1 + 0.3 * jax.random.normal(k2, (n1,), dtype=jnp.float32)
    res1 = metrics_r_forward(out1, tar1)
    jax.block_until_ready((res1[0], res1[1], res1[2]))
    _check(res1, _reference(out1, tar1), "case1")

    # Case 2: unaligned N -> bulk via Pallas, small tail folded in plain JAX.
    n2 = 5000
    tar2 = jax.random.normal(k3, (n2,), dtype=jnp.float32) * 1.5 - 0.2
    out2 = tar2 + 0.5 * jax.random.normal(k4, (n2,), dtype=jnp.float32)
    res2 = metrics_r_forward(out2, tar2)
    jax.block_until_ready((res2[0], res2[1], res2[2]))
    _check(res2, _reference(out2, tar2), "case2")

    # Case 3: small max_tile_rows so a small input exercises the multi-block
    # grid, the 2-way core split (incl. one gated duplicate step) and a partial
    # last block.  Targets carry an offset to exercise the shifted ss_tot path.
    n3 = 45000
    tar3 = jax.random.normal(k5, (n3,), dtype=jnp.float32) * 0.5 + 10.0
    out3 = tar3 + 0.2 * jax.random.normal(k6, (n3,), dtype=jnp.float32)
    res3 = metrics_r_forward(out3, tar3, max_tile_rows=128)
    jax.block_until_ready((res3[0], res3[1], res3[2]))
    _check(res3, _reference(out3, tar3), "case3")

    print("KERNEL_OK")
</pallas_src>

<mosaic_0001>
module attributes {stable_mosaic.version = 11 : i64} {
  func.func @kernel(%arg0: i32, %arg1: i32, %arg2: memref<8x128xf32, #tpu.memory_space<vmem>>, %arg3: memref<16x128xf32, #tpu.memory_space<vmem>>, %arg4: memref<16x128xf32, #tpu.memory_space<vmem>>, %arg5: memref<1x4x8x128xf32, #tpu.memory_space<vmem>>) attributes {dimension_semantics = [#tpu.dimension_semantics<parallel>, #tpu.dimension_semantics<arbitrary>], iteration_bounds = array<i64: 1, 1>, scalar_prefetch = 0 : i64, scratch_operands = 0 : i64, tpu.core_type = #tpu.core_type<tc>, window_params = [{pipeline_mode = #tpu.pipeline_mode<synchronous>, transform_indices = @transform_0, window_bounds = array<i64: 8, 128>}, {transform_indices = @transform_1, window_bounds = array<i64: 16, 128>}, {transform_indices = @transform_2, window_bounds = array<i64: 16, 128>}, {transform_indices = @transform_3, window_bounds = array<i64: 1, 4, 8, 128>}]} {
    %c1_i32 = arith.constant 1 : i32
    %0 = arith.muli %arg0, %c1_i32 : i32
    %1 = arith.addi %0, %arg1 : i32
    %c0_i32 = arith.constant 0 : i32
    %2 = arith.cmpi eq, %arg1, %c0_i32 : i32
    %3 = arith.extui %2 : i1 to i32
    %c0_i32_0 = arith.constant 0 : i32
    %4 = arith.cmpi ne, %3, %c0_i32_0 : i32
    scf.if %4 {
      %cst = arith.constant 0.000000e+00 : f32
      %8 = vector.broadcast %cst : f32 to vector<4x8x128xf32>
      %c0 = arith.constant 0 : index
      %c0_3 = arith.constant 0 : index
      %c0_4 = arith.constant 0 : index
      %c0_5 = arith.constant 0 : index
      %9 = vector.load %arg5[%c0, %c0_3, %c0_4, %c0_5] : memref<1x4x8x128xf32, #tpu.memory_space<vmem>>, vector<1x4x8x128xf32>
      %10 = vector.shape_cast %9 : vector<1x4x8x128xf32> to vector<4x8x128xf32>
      %11 = vector.shape_cast %8 : vector<4x8x128xf32> to vector<1x4x8x128xf32>
      tpu.vector_store %arg5[%c0, %c0_3, %c0_4, %c0_5], %11 {strides = array<i32>} : memref<1x4x8x128xf32, #tpu.memory_space<vmem>>, vector<1x4x8x128xf32>,
    } else {
    }
    %c1_i32_1 = arith.constant 1 : i32
    %5 = arith.cmpi slt, %1, %c1_i32_1 : i32
    %6 = arith.extui %5 : i1 to i32
    %c0_i32_2 = arith.constant 0 : i32
    %7 = arith.cmpi ne, %6, %c0_i32_2 : i32
    scf.if %7 {
      %c0 = arith.constant 0 : index
      %c0_3 = arith.constant 0 : index
      %8 = vector.load %arg2[%c0, %c0_3] : memref<8x128xf32, #tpu.memory_space<vmem>>, vector<8x128xf32>
      %cst = arith.constant 0.000000e+00 : f32
      %9 = vector.broadcast %cst : f32 to vector<8x128xf32>
      %c0_i32_4 = arith.constant 0 : i32
      %c2_i32 = arith.constant 2 : i32
      %10 = arith.addi %c0_i32_4, %c2_i32 : i32
      %c1_i32_5 = arith.constant 1 : i32
      %11:4 = scf.for %arg6 = %c0_i32_4 to %10 step %c1_i32_5 iter_args(%arg7 = %9, %arg8 = %9, %arg9 = %9, %arg10 = %9) -> (vector<8x128xf32>, vector<8x128xf32>, vector<8x128xf32>, vector<8x128xf32>)  : i32 {
        %c8_i32 = arith.constant 8 : i32
        %36 = arith.muli %arg6, %c8_i32 : i32
        %37 = tpu.assume_multiple %36, 8 : i32
        %38 = arith.index_cast %37 : i32 to index
        %c0_36 = arith.constant 0 : index
        %39 = vector.load %arg3[%38, %c0_36] : memref<16x128xf32, #tpu.memory_space<vmem>>, vector<8x128xf32>
        %40 = arith.index_cast %37 : i32 to index
        %c0_37 = arith.constant 0 : index
        %41 = vector.load %arg4[%40, %c0_37] : memref<16x128xf32, #tpu.memory_space<vmem>>, vector<8x128xf32>
        %42 = arith.subf %41, %39 : vector<8x128xf32>
        %43 = arith.subf %41, %8 : vector<8x128xf32>
        %44 = math.absf %42 : vector<8x128xf32>
        %45 = arith.addf %arg7, %44 : vector<8x128xf32>
        %46 = arith.mulf %42, %42 : vector<8x128xf32>
        %47 = arith.addf %arg8, %46 : vector<8x128xf32>
        %48 = arith.addf %arg9, %43 : vector<8x128xf32>
        %49 = arith.mulf %43, %43 : vector<8x128xf32>
        %50 = arith.addf %arg10, %49 : vector<8x128xf32>
        scf.yield %45, %47, %48, %50 : vector<8x128xf32>, vector<8x128xf32>, vector<8x128xf32>, vector<8x128xf32>
      }
      %c2_i32_6 = arith.constant 2 : i32
      %c0_7 = arith.constant 0 : index
      %c0_8 = arith.constant 0 : index
      %c0_9 = arith.constant 0 : index
      %c0_10 = arith.constant 0 : index
      %12 = vector.load %arg5[%c0_7, %c0_8, %c0_9, %c0_10] : memref<1x4x8x128xf32, #tpu.memory_space<vmem>>, vector<1x1x8x128xf32>
      %13 = vector.shape_cast %12 : vector<1x1x8x128xf32> to vector<8x128xf32>
      %14 = arith.addf %13, %11#0 : vector<8x128xf32>
      %c0_11 = arith.constant 0 : index
      %c0_12 = arith.constant 0 : index
      %c0_13 = arith.constant 0 : index
      %c0_14 = arith.constant 0 : index
      %15 = vector.load %arg5[%c0_11, %c0_12, %c0_13, %c0_14] : memref<1x4x8x128xf32, #tpu.memory_space<vmem>>, vector<1x1x8x128xf32>
      %16 = vector.shape_cast %15 : vector<1x1x8x128xf32> to vector<8x128xf32>
      %17 = vector.shape_cast %14 : vector<8x128xf32> to vector<1x1x8x128xf32>
      tpu.vector_store %arg5[%c0_11, %c0_12, %c0_13, %c0_14], %17 {strides = array<i32>} : memref<1x4x8x128xf32, #tpu.memory_space<vmem>>, vector<1x1x8x128xf32>,
      %c0_15 = arith.constant 0 : index
      %c1 = arith.constant 1 : index
      %c0_16 = arith.constant 0 : index
      %c0_17 = arith.constant 0 : index
      %18 = vector.load %arg5[%c0_15, %c1, %c0_16, %c0_17] : memref<1x4x8x128xf32, #tpu.memory_space<vmem>>, vector<1x1x8x128xf32>
      %19 = vector.shape_cast %18 : vector<1x1x8x128xf32> to vector<8x128xf32>
      %20 = arith.addf %19, %11#1 : vector<8x128xf32>
      %c0_18 = arith.constant 0 : index
      %c1_19 = arith.constant 1 : index
      %c0_20 = arith.constant 0 : index
      %c0_21 = arith.constant 0 : index
      %21 = vector.load %arg5[%c0_18, %c1_19, %c0_20, %c0_21] : memref<1x4x8x128xf32, #tpu.memory_space<vmem>>, vector<1x1x8x128xf32>
      %22 = vector.shape_cast %21 : vector<1x1x8x128xf32> to vector<8x128xf32>
      %23 = vector.shape_cast %20 : vector<8x128xf32> to vector<1x1x8x128xf32>
      tpu.vector_store %arg5[%c0_18, %c1_19, %c0_20, %c0_21], %23 {strides = array<i32>} : memref<1x4x8x128xf32, #tpu.memory_space<vmem>>, vector<1x1x8x128xf32>,
      %c0_22 = arith.constant 0 : index
      %c2 = arith.constant 2 : index
      %c0_23 = arith.constant 0 : index
      %c0_24 = arith.constant 0 : index
      %24 = vector.load %arg5[%c0_22, %c2, %c0_23, %c0_24] : memref<1x4x8x128xf32, #tpu.memory_space<vmem>>, vector<1x1x8x128xf32>
      %25 = vector.shape_cast %24 : vector<1x1x8x128xf32> to vector<8x128xf32>
      %26 = arith.addf %25, %11#2 : vector<8x128xf32>
      %c0_25 = arith.constant 0 : index
      %c2_26 = arith.constant 2 : index
      %c0_27 = arith.constant 0 : index
      %c0_28 = arith.constant 0 : index
      %27 = vector.load %arg5[%c0_25, %c2_26, %c0_27, %c0_28] : memref<1x4x8x128xf32, #tpu.memory_space<vmem>>, vector<1x1x8x128xf32>
      %28 = vector.shape_cast %27 : vector<1x1x8x128xf32> to vector<8x128xf32>
      %29 = vector.shape_cast %26 : vector<8x128xf32> to vector<1x1x8x128xf32>
      tpu.vector_store %arg5[%c0_25, %c2_26, %c0_27, %c0_28], %29 {strides = array<i32>} : memref<1x4x8x128xf32, #tpu.memory_space<vmem>>, vector<1x1x8x128xf32>,
      %c0_29 = arith.constant 0 : index
      %c3 = arith.constant 3 : index
      %c0_30 = arith.constant 0 : index
      %c0_31 = arith.constant 0 : index
      %30 = vector.load %arg5[%c0_29, %c3, %c0_30, %c0_31] : memref<1x4x8x128xf32, #tpu.memory_space<vmem>>, vector<1x1x8x128xf32>
      %31 = vector.shape_cast %30 : vector<1x1x8x128xf32> to vector<8x128xf32>
      %32 = arith.addf %31, %11#3 : vector<8x128xf32>
      %c0_32 = arith.constant 0 : index
      %c3_33 = arith.constant 3 : index
      %c0_34 = arith.constant 0 : index
      %c0_35 = arith.constant 0 : index
      %33 = vector.load %arg5[%c0_32, %c3_33, %c0_34, %c0_35] : memref<1x4x8x128xf32, #tpu.memory_space<vmem>>, vector<1x1x8x128xf32>
      %34 = vector.shape_cast %33 : vector<1x1x8x128xf32> to vector<8x128xf32>
      %35 = vector.shape_cast %32 : vector<8x128xf32> to vector<1x1x8x128xf32>
      tpu.vector_store %arg5[%c0_32, %c3_33, %c0_34, %c0_35], %35 {strides = array<i32>} : memref<1x4x8x128xf32, #tpu.memory_space<vmem>>, vector<1x1x8x128xf32>,
    } else {
    }
    return
  }
  func.func @transform_0(%arg0: i32, %arg1: i32) -> (i32, i32) {
    %c0_i32 = arith.constant 0 : i32
    %c0_i32_0 = arith.constant 0 : i32
    %c0_i32_1 = arith.constant 0 : i32
    return %c0_i32, %c0_i32_0 : i32, i32
  }
  func.func @transform_1(%arg0: i32, %arg1: i32) -> (i32, i32) {
    %c1_i32 = arith.constant 1 : i32
    %0 = arith.muli %arg0, %c1_i32 : i32
    %1 = arith.addi %0, %arg1 : i32
    %c0_i32 = arith.constant 0 : i32
    %2 = arith.minsi %1, %c0_i32 : i32
    %c0_i32_0 = arith.constant 0 : i32
    %c0_i32_1 = arith.constant 0 : i32
    return %2, %c0_i32_0 : i32, i32
  }
  func.func @transform_2(%arg0: i32, %arg1: i32) -> (i32, i32) {
    %c1_i32 = arith.constant 1 : i32
    %0 = arith.muli %arg0, %c1_i32 : i32
    %1 = arith.addi %0, %arg1 : i32
    %c0_i32 = arith.constant 0 : i32
    %2 = arith.minsi %1, %c0_i32 : i32
    %c0_i32_0 = arith.constant 0 : i32
    %c0_i32_1 = arith.constant 0 : i32
    return %2, %c0_i32_0 : i32, i32
  }
  func.func @transform_3(%arg0: i32, %arg1: i32) -> (i32, i32, i32, i32) {
    %c0_i32 = arith.constant 0 : i32
    %c0_i32_0 = arith.constant 0 : i32
    %c0_i32_1 = arith.constant 0 : i32
    %c0_i32_2 = arith.constant 0 : i32
    return %arg0, %c0_i32, %c0_i32_0, %c0_i32_1 : i32, i32, i32, i32
  }
}

</mosaic_0001>

<llo_original>
// kernel: metrics_r_forward.1
$region0: #{metrics_r_forward.1}
  #allocation0 [shape = 'u32[]', space=smem, size = 0x4, offset = 0x4, fixed_abs, tag = 'smem constant byte address 0x4 - core index']
  #allocation1 [shape = 'u32[72,128]{1,0:T(1,128)}', space=vmem, size = 0x9000, scoped, tag = 'internal scratch']
  %s0 = inlined_call_operand.vmem [shape: f32[8,128], index: 0, kind: input, shape index: {}]
  %s1 = inlined_call_operand.hbm [shape: f32[16,128], index: 1, kind: input, shape index: {}]
  %s2 = inlined_call_operand.hbm [shape: f32[16,128], index: 2, kind: input, shape index: {}]
  %s3 = inlined_call_operand.vmem [shape: f32[1,4,8,128], index: 3, kind: output, shape index: {}]
  %s4 = sld [smem:[#allocation0]]
  $region45: #{metrics_r_forward.1} parent=0
    _
  %s6 = ssub.s32 1, %s4
  %s7 = scalar_select 0, %s6, %s4
  $region1: #{metrics_r_forward.1} parent=0
    #allocation2 [shape = 'u8[8192]{0}', space=vmem, size = 0x2000, scoped, tag = 'input window, operand 1, single buffered']
    #allocation3 [shape = 's32[1]{0}', space=sflag, size = 0x4, scoped, tag = 'scoped memory for metrics_r_forward.1']
    #allocation4 [shape = 'u8[8192]{0}', space=vmem, size = 0x2000, scoped, tag = 'input window, operand 2, single buffered']
    #allocation5 [shape = 's32[1]{0}', space=sflag, size = 0x4, scoped, tag = 'scoped memory for metrics_r_forward.1']
    %8 = vsyncpa [#allocation3], 0
    %9 = vsyncpa [#allocation5], 0
    // Predicated region
    $region2: #{metrics_r_forward.1} parent=1 // pred_check
      _
    $region3: #{metrics_r_forward.1} parent=1 // pred_check_branch
      %11 = sbr.rel (0) target = $region5
    $region4: #{metrics_r_forward.1} parent=1 // pred_region
      _
    $region5: #{metrics_r_forward.1} parent=1 // pred_fallthru
      _
    // Predicated region
    $region6: #{metrics_r_forward.1} parent=1 // pred_check
      _
    $region7: #{metrics_r_forward.1} parent=1 // pred_check_branch
      %13 = sbr.rel (0) target = $region9
    $region8: #{metrics_r_forward.1} parent=1 // pred_region
      %s14 = sadd.s32 0, 0
      %p15 = scmp.lt.s32.totalorder %s14, 0
      %s16 = scalar_select %p15, %s14, 0
      %s17 = smul.u32 2, %s16
      %19 = vsyncadd [#allocation3], 0
      %s20 = smul.addr %s17, 8
      %s21 = scalar_lea.hbm %s1, %s20
      %s22 = sshll.u32 %s21, 4
      %s23 = int_to_ptr.hbm [resolvable:$true] %s22
      %s24 = sshll.u32 [#allocation2], 4
      %s25 = int_to_ptr.vmem [resolvable:$true] %s24
      %30 = dma.hbm_to_vmem [thread:$0]  %s23, 256, %s25, [#allocation3], 128, 128, 8
    $region9: #{metrics_r_forward.1} parent=1 // pred_fallthru
      _
    // Predicated region
    $region10: #{metrics_r_forward.1} parent=1 // pred_check
      _
    $region11: #{metrics_r_forward.1} parent=1 // pred_check_branch
      %32 = sbr.rel (0) target = $region13
    $region12: #{metrics_r_forward.1} parent=1 // pred_region
      %s33 = sadd.s32 0, 0
      %p34 = scmp.lt.s32.totalorder %s33, 0
      %s35 = scalar_select %p34, %s33, 0
      %s36 = smul.u32 2, %s35
      %38 = vsyncadd [#allocation5], 0
      %s39 = smul.addr %s36, 8
      %s40 = scalar_lea.hbm %s2, %s39
      %s41 = sshll.u32 %s40, 4
      %s42 = int_to_ptr.hbm [resolvable:$true] %s41
      %s43 = sshll.u32 [#allocation4], 4
      %s44 = int_to_ptr.vmem [resolvable:$true] %s43
      %49 = dma.hbm_to_vmem [thread:$0]  %s42, 256, %s44, [#allocation5], 128, 128, 8
    $region13: #{metrics_r_forward.1} parent=1 // pred_fallthru
      _
    // Predicated region
    $region14: #{metrics_r_forward.1} parent=1 // pred_check
      _
    $region15: #{metrics_r_forward.1} parent=1 // pred_check_branch
      %51 = sbr.rel (0) target = $region17
    $region16: #{metrics_r_forward.1} parent=1 // pred_region
      %53 = dma.done [#allocation3], 256
    $region17: #{metrics_r_forward.1} parent=1 // pred_fallthru
      _
    // Predicated region
    $region18: #{metrics_r_forward.1} parent=1 // pred_check
      _
    $region19: #{metrics_r_forward.1} parent=1 // pred_check_branch
      %55 = sbr.rel (0) target = $region21
    $region20: #{metrics_r_forward.1} parent=1 // pred_region
      %57 = dma.done [#allocation5], 256
    $region21: #{metrics_r_forward.1} parent=1 // pred_fallthru
      _
    %s58 = sadd.s32 0, 0
    %p59 = scmp.lt.s32.totalorder %s58, 0
    %s60 = scalar_select %p59, %s58, 0
    %s61 = smul.u32 2, %s60
    %s62 = sadd.s32 0, 0
    %p63 = scmp.lt.s32.totalorder %s62, 0
    %s64 = scalar_select %p63, %s62, 0
    %s65 = smul.u32 2, %s64
    %s66 = sadd.s32 0, 0
    %p67 = scmp.eq.s32.totalorder 0, 0
    // Predicated region
    $region22: #{metrics_r_forward.1} parent=1 // pred_check
      %p68 = pneg %p67
    $region23: #{metrics_r_forward.1} parent=1 // pred_check_branch
      %70 = sbr.rel (%p68) target = $region25
    $region24: #{metrics_r_forward.1} parent=1 // pred_region
      %71 = vst [vmem:[%s3] sm:$0xff] 0.0
      %72 = vst [vmem:[%s3 + $0x8] sm:$0xff] 0.0
      %73 = vst [vmem:[%s3 + $0x10] sm:$0xff] 0.0
      %74 = vst [vmem:[%s3 + $0x18] sm:$0xff] 0.0
    $region25: #{metrics_r_forward.1} parent=1 // pred_fallthru
      _
    %p75 = scmp.lt.s32.totalorder %s66, 1
    // Predicated region
    $region26: #{metrics_r_forward.1} parent=1 // pred_check
      %p76 = pneg %p75
    $region27: #{metrics_r_forward.1} parent=1 // pred_check_branch
      %78 = sbr.rel (%p76) target = $region29
    $region28: #{metrics_r_forward.1} parent=1 // pred_region
      %v79 = vld [vmem:[%s0] sm:$0xff]
      loop: start=0, step=1, limit=2
      $region30: #{metrics_r_forward.1} parent=28 // loop_pre_header
        _
      $region31: #{metrics_r_forward.1} parent=28 // loop_header
        %s81 = sphi 0, %s85
        %p82 = scmp.ge.s32.totalorder %s81, 2
        %v86 = vphi 0.0, %v98
        %v87 = vphi 0.0, %v100
        %v88 = vphi 0.0, %v101
        %v89 = vphi 0.0, %v103
      $region32: #{metrics_r_forward.1} parent=28 // loop_header_branch
        %84 = sbr.rel (%p82) target = $region36
      $region33: #{metrics_r_forward.1} parent=28 // loop_body
        %s90 = smul.u32 %s81, 8
        %s91 = scalar_lea.vmem [#allocation2], %s90
        %v92 = vld [vmem:[%s91] sm:$0xff]
        %s93 = scalar_lea.vmem [#allocation4], %s90
        %v94 = vld [vmem:[%s93] sm:$0xff]
        %v95 = vsub.f32 %v94, %v92
        %v96 = vsub.f32 %v94, %v79
        %v97 = vand.u32 2147483647, %v95
        %v98 = vadd.f32 %v86, %v97
        %v99 = vmul.f32 %v95, %v95
        %v100 = vadd.f32 %v87, %v99
        %v101 = vadd.f32 %v88, %v96
        %v102 = vmul.f32 %v96, %v96
        %v103 = vadd.f32 %v89, %v102
      $region34: #{metrics_r_forward.1} parent=28 // loop_footer
        %s85 = sadd.s32 1, %s81
      $region35: #{metrics_r_forward.1} parent=28 // loop_footer_branch
        %80 = sbr.rel target = $region31
      $region36: #{metrics_r_forward.1} parent=28 // loop_exit
        _
      %v104 = vld [vmem:[%s3] sm:$0xff]
      %v105 = vadd.f32 %v104, %v86
      %106 = vst [vmem:[%s3] sm:$0xff] %v105
      %s107 = scalar_lea.vmem %s3, 8
      %v108 = vld [vmem:[%s107] sm:$0xff]
      %v109 = vadd.f32 %v108, %v87
      %110 = vst [vmem:[%s107] sm:$0xff] %v109
      %s111 = scalar_lea.vmem %s3, 16
      %v112 = vld [vmem:[%s111] sm:$0xff]
      %v113 = vadd.f32 %v112, %v88
      %114 = vst [vmem:[%s111] sm:$0xff] %v113
      %s115 = scalar_lea.vmem %s3, 24
      %v116 = vld [vmem:[%s115] sm:$0xff]
      %v117 = vadd.f32 %v116, %v89
      %118 = vst [vmem:[%s115] sm:$0xff] %v117
    $region29: #{metrics_r_forward.1} parent=1 // pred_fallthru
      _
    // Predicated region
    $region37: #{metrics_r_forward.1} parent=1 // pred_check
      _
    $region38: #{metrics_r_forward.1} parent=1 // pred_check_branch
      %120 = sbr.rel (0) target = $region40
    $region39: #{metrics_r_forward.1} parent=1 // pred_region
      _
    $region40: #{metrics_r_forward.1} parent=1 // pred_fallthru
      _
    // Predicated region
    $region41: #{metrics_r_forward.1} parent=1 // pred_check
      _
    $region42: #{metrics_r_forward.1} parent=1 // pred_check_branch
      %122 = sbr.rel (0) target = $region44
    $region43: #{metrics_r_forward.1} parent=1 // pred_region
      _
    $region44: #{metrics_r_forward.1} parent=1 // pred_fallthru
      _
    %123 = vsyncpa [#allocation3], 1
    %124 = vsyncpa [#allocation5], 1

</llo_original>
